<compile_context>
chip_gen: v5e
topology: v5e:2x2
jax: 0.10.0
libtpu: 0.0.40
codegen_flags: <defaults>
</compile_context>

<pallas_src>
import functools

import jax
import jax.numpy as jnp
from jax import lax
from jax.experimental import pallas as pl
from jax.experimental.pallas import tpu as pltpu

_LANE = 128


def nima_kernel(x_ref, w1_ref, b1_ref, w2_ref, b2_ref, o_ref, acc_ref, *,
                inv_hw, n_chunks, chunk):
    # x_ref : (bB, C, tHW)  -- HW on the lane axis
    # w1_ref: (C, F)   b1_ref: (1, F)
    # w2_ref: (F, 10)  b2_ref: (1, 10)
    # o_ref : (bB, 10)
    # acc_ref: (bB, C, chunk) f32 scratch (persists across the HW grid axis)
    hw_idx = pl.program_id(1)

    @pl.when(hw_idx == 0)
    def _():
        acc_ref[...] = jnp.zeros_like(acc_ref)

    # Steady state: VPU elementwise accumulation of `chunk`-lane slabs.
    # No per-step cross-lane XLU reduce; the one lane reduce happens in the
    # finalize branch below, once per batch tile.
    if n_chunks == 1:
        acc_ref[...] += x_ref[...].astype(jnp.float32)
    elif n_chunks <= 8:
        for k in range(n_chunks):
            acc_ref[...] += x_ref[:, :, k * chunk:(k + 1) * chunk].astype(jnp.float32)
    else:
        def body(k, carry):
            off = pl.multiple_of(k * chunk, chunk)
            acc_ref[...] += x_ref[:, :, pl.ds(off, chunk)].astype(jnp.float32)
            return carry
        lax.fori_loop(0, n_chunks, body, 0, unroll=8)

    @pl.when(hw_idx == pl.num_programs(1) - 1)
    def _():
        # ---- synthetic base_model: global average pool + Linear + ReLU ----
        pooled = jnp.sum(acc_ref[...], axis=-1) * inv_hw                     # (bB, C)
        feat = jnp.dot(pooled, w1_ref[...],
                       preferred_element_type=jnp.float32) + b1_ref[...]
        feat = jnp.maximum(feat, 0.0)                                        # (bB, F)

        # ---- head: (Dropout == identity in eval) -> Linear -> Softmax(dim=1) ----
        logits = jnp.dot(feat, w2_ref[...],
                         preferred_element_type=jnp.float32) + b2_ref[...]   # (bB, 10)
        m = jnp.max(logits, axis=1, keepdims=True)
        e = jnp.exp(logits - m)
        denom = jnp.sum(e, axis=1, keepdims=True)
        o_ref[...] = (e / denom).astype(o_ref.dtype)   # exact divide: rows sum to 1


def _pick_batch_tile(b):
    """Batch tile satisfying sublane constraints; keeps >=2 batch blocks when possible."""
    if b <= 8 or b % 8 != 0:
        return b                      # full batch (block == array dim is always legal)
    bb = 8
    # Grow toward 128 rows (better MXU utilization in the finalize matmul) while
    # keeping at least 2 batch blocks so v7x's 2 TensorCores both get work.
    while bb * 2 <= 128 and b % (bb * 2) == 0 and b // (bb * 2) >= 2:
        bb *= 2
    return bb


def _pick_hw_tile(hw, bytes_per_lane, block_budget_bytes, hw_tile_cap=None):
    """Largest legal HW tile whose block fits in the per-buffer VMEM budget."""
    max_lanes = max(_LANE, block_budget_bytes // max(bytes_per_lane, 1))
    if hw_tile_cap is not None:
        max_lanes = min(max_lanes, hw_tile_cap)
    if hw <= max_lanes or hw % _LANE != 0:
        return hw                     # full-extent block (always legal)
    best = _LANE
    d = _LANE
    while d <= max_lanes:
        if hw % d == 0:
            best = d
        d += _LANE
    return best


def nima_forward(x_nchw, w1, b1, w2, b2, *,
                 hw_tile_cap=None,
                 x_block_budget_bytes=16 << 20,   # per buffer; x is double-buffered
                 vmem_limit_bytes=48 << 20):
    """x_nchw: (B, C, H, W) -> (B, 10) softmax probabilities."""
    B, C, H, W = x_nchw.shape
    HW = H * W
    F = w1.shape[1]

    # NCHW viewed as (B, C, HW): free reshape, HW lands on the lane axis.
    x = x_nchw.reshape(B, C, HW)

    bB = _pick_batch_tile(B)
    tHW = _pick_hw_tile(HW, bB * C * x.dtype.itemsize, x_block_budget_bytes, hw_tile_cap)
    grid = (B // bB, HW // tHW)

    chunk = _LANE if tHW % _LANE == 0 else tHW
    n_chunks = tHW // chunk

    kernel = functools.partial(nima_kernel, inv_hw=1.0 / float(HW),
                               n_chunks=n_chunks, chunk=chunk)

    def resident(shape):
        # Weights stay VMEM-resident across all grid steps (constant index map).
        return pl.BlockSpec(shape, lambda b, hw: (0, 0))

    flops = B * C * HW + 2 * B * C * F + 2 * B * F * 10   # pooling adds + matmuls
    bytes_accessed = (x.size * x.dtype.itemsize
                      + (w1.size + b1.size + w2.size + b2.size) * 4
                      + B * 10 * 4)

    return pl.pallas_call(
        kernel,
        out_shape=jax.ShapeDtypeStruct((B, 10), jnp.float32),
        grid_spec=pltpu.PrefetchScalarGridSpec(
            num_scalar_prefetch=0,
            grid=grid,
            in_specs=[
                pl.BlockSpec((bB, C, tHW), lambda b, hw: (b, 0, hw)),
                resident((C, F)),
                resident((1, F)),
                resident((F, 10)),
                resident((1, 10)),
            ],
            out_specs=pl.BlockSpec((bB, 10), lambda b, hw: (b, 0)),
            scratch_shapes=[pltpu.VMEM((bB, C, chunk), jnp.float32)],
        ),
        compiler_params=pltpu.CompilerParams(
            dimension_semantics=("parallel", "arbitrary"),
            vmem_limit_bytes=vmem_limit_bytes),
        cost_estimate=pl.CostEstimate(
            flops=flops,
            transcendentals=B * 10,
            bytes_accessed=bytes_accessed),
    )(x, w1, b1, w2, b2)


def nima_reference(x_nchw, w1, b1, w2, b2):
    """Pure-JAX reference with identical semantics."""
    pooled = jnp.mean(x_nchw, axis=(2, 3))               # (B, C)
    feat = jnp.maximum(pooled @ w1 + b1, 0.0)            # (B, F)
    logits = feat @ w2 + b2                              # (B, 10)
    return jax.nn.softmax(logits, axis=1)


if __name__ == "__main__":
    key = jax.random.PRNGKey(0)
    kx, k1, k2, k3, k4 = jax.random.split(key, 5)

    B, C, H, W = 2, 4, 16, 16      # small NCHW input
    F = 32                          # input_features of the head

    x = jax.random.normal(kx, (B, C, H, W), dtype=jnp.float32)

    # Deterministic synthetic parameters (no checkpoint loading).
    w1 = jax.random.normal(k1, (C, F), dtype=jnp.float32) * 0.1
    b1 = jax.random.normal(k2, (1, F), dtype=jnp.float32) * 0.01
    w2 = jax.random.normal(k3, (F, 10), dtype=jnp.float32) * 0.1
    b2 = jax.random.normal(k4, (1, 10), dtype=jnp.float32) * 0.01

    ref = nima_reference(x, w1, b1, w2, b2)

    # Default config: full-HW single block (no reduction grid axis).
    out = jax.block_until_ready(nima_forward(x, w1, b1, w2, b2))
    assert out.shape == (B, 10)
    assert jnp.allclose(jnp.sum(out, axis=1), 1.0, atol=1e-4)
    assert jnp.allclose(out, ref, atol=1e-3, rtol=1e-3)

    # Capped config: HW=256 splits into 2 reduction steps, exercising the
    # accumulator / pl.when init+finalize path across the grid axis.
    out2 = jax.block_until_ready(nima_forward(x, w1, b1, w2, b2, hw_tile_cap=128))
    assert jnp.allclose(jnp.sum(out2, axis=1), 1.0, atol=1e-4)
    assert jnp.allclose(out2, ref, atol=1e-3, rtol=1e-3)

    print("KERNEL_OK")
</pallas_src>

<mosaic_0001>
module attributes {stable_mosaic.version = 11 : i64} {
  func.func @nima_kernel(%arg0: i32, %arg1: i32, %arg2: memref<2x4x256xf32, #tpu.memory_space<vmem>>, %arg3: memref<4x32xf32, #tpu.memory_space<vmem>>, %arg4: memref<1x32xf32, #tpu.memory_space<vmem>>, %arg5: memref<32x10xf32, #tpu.memory_space<vmem>>, %arg6: memref<1x10xf32, #tpu.memory_space<vmem>>, %arg7: memref<2x10xf32, #tpu.memory_space<vmem>>, %arg8: memref<2x4x128xf32, #tpu.memory_space<vmem>>) attributes {dimension_semantics = [#tpu.dimension_semantics<parallel>, #tpu.dimension_semantics<arbitrary>], iteration_bounds = array<i64: 1, 1>, scalar_prefetch = 0 : i64, scratch_operands = 1 : i64, tpu.core_type = #tpu.core_type<tc>, window_params = [{transform_indices = @transform_0, window_bounds = array<i64: 2, 4, 256>}, {pipeline_mode = #tpu.pipeline_mode<synchronous>, transform_indices = @transform_1, window_bounds = array<i64: 4, 32>}, {pipeline_mode = #tpu.pipeline_mode<synchronous>, transform_indices = @transform_2, window_bounds = array<i64: 1, 32>}, {pipeline_mode = #tpu.pipeline_mode<synchronous>, transform_indices = @transform_3, window_bounds = array<i64: 32, 10>}, {pipeline_mode = #tpu.pipeline_mode<synchronous>, transform_indices = @transform_4, window_bounds = array<i64: 1, 10>}, {transform_indices = @transform_5, window_bounds = array<i64: 2, 10>}]} {
    %c0_i32 = arith.constant 0 : i32
    %0 = arith.cmpi eq, %arg1, %c0_i32 : i32
    %1 = arith.extui %0 : i1 to i32
    %c0_i32_0 = arith.constant 0 : i32
    %2 = arith.cmpi ne, %1, %c0_i32_0 : i32
    scf.if %2 {
      %cst = arith.constant 0.000000e+00 : f32
      %14 = vector.broadcast %cst : f32 to vector<2x4x128xf32>
      %c0_19 = arith.constant 0 : index
      %c0_20 = arith.constant 0 : index
      %c0_21 = arith.constant 0 : index
      %15 = vector.load %arg8[%c0_19, %c0_20, %c0_21] : memref<2x4x128xf32, #tpu.memory_space<vmem>>, vector<2x4x128xf32>
      tpu.vector_store %arg8[%c0_19, %c0_20, %c0_21], %14 {strides = array<i32>} : memref<2x4x128xf32, #tpu.memory_space<vmem>>, vector<2x4x128xf32>,
    } else {
    }
    %c0 = arith.constant 0 : index
    %c0_1 = arith.constant 0 : index
    %c0_2 = arith.constant 0 : index
    %3 = vector.load %arg8[%c0, %c0_1, %c0_2] : memref<2x4x128xf32, #tpu.memory_space<vmem>>, vector<2x4x128xf32>
    %c0_3 = arith.constant 0 : index
    %c0_4 = arith.constant 0 : index
    %c0_5 = arith.constant 0 : index
    %4 = vector.load %arg2[%c0_3, %c0_4, %c0_5] : memref<2x4x256xf32, #tpu.memory_space<vmem>>, vector<2x4x128xf32>
    %5 = arith.addf %3, %4 : vector<2x4x128xf32>
    %c0_6 = arith.constant 0 : index
    %c0_7 = arith.constant 0 : index
    %c0_8 = arith.constant 0 : index
    %6 = vector.load %arg8[%c0_6, %c0_7, %c0_8] : memref<2x4x128xf32, #tpu.memory_space<vmem>>, vector<2x4x128xf32>
    tpu.vector_store %arg8[%c0_6, %c0_7, %c0_8], %5 {strides = array<i32>} : memref<2x4x128xf32, #tpu.memory_space<vmem>>, vector<2x4x128xf32>,
    %c0_9 = arith.constant 0 : index
    %c0_10 = arith.constant 0 : index
    %c0_11 = arith.constant 0 : index
    %7 = vector.load %arg8[%c0_9, %c0_10, %c0_11] : memref<2x4x128xf32, #tpu.memory_space<vmem>>, vector<2x4x128xf32>
    %c0_12 = arith.constant 0 : index
    %c0_13 = arith.constant 0 : index
    %c128 = arith.constant 128 : index
    %8 = vector.load %arg2[%c0_12, %c0_13, %c128] : memref<2x4x256xf32, #tpu.memory_space<vmem>>, vector<2x4x128xf32>
    %9 = arith.addf %7, %8 : vector<2x4x128xf32>
    %c0_14 = arith.constant 0 : index
    %c0_15 = arith.constant 0 : index
    %c0_16 = arith.constant 0 : index
    %10 = vector.load %arg8[%c0_14, %c0_15, %c0_16] : memref<2x4x128xf32, #tpu.memory_space<vmem>>, vector<2x4x128xf32>
    tpu.vector_store %arg8[%c0_14, %c0_15, %c0_16], %9 {strides = array<i32>} : memref<2x4x128xf32, #tpu.memory_space<vmem>>, vector<2x4x128xf32>,
    %c0_i32_17 = arith.constant 0 : i32
    %11 = arith.cmpi eq, %arg1, %c0_i32_17 : i32
    %12 = arith.extui %11 : i1 to i32
    %c0_i32_18 = arith.constant 0 : i32
    %13 = arith.cmpi ne, %12, %c0_i32_18 : i32
    scf.if %13 {
      %c0_19 = arith.constant 0 : index
      %c0_20 = arith.constant 0 : index
      %c0_21 = arith.constant 0 : index
      %14 = vector.load %arg8[%c0_19, %c0_20, %c0_21] : memref<2x4x128xf32, #tpu.memory_space<vmem>>, vector<2x4x128xf32>
      %cst = arith.constant dense<0.000000e+00> : vector<2x4xf32>
      %15 = vector.multi_reduction <add>, %14, %cst [2] : vector<2x4x128xf32> to vector<2x4xf32>
      %cst_22 = arith.constant 3.906250e-03 : f32
      %16 = vector.broadcast %cst_22 : f32 to vector<2x4xf32>
      %17 = arith.mulf %15, %16 : vector<2x4xf32>
      %c0_23 = arith.constant 0 : index
      %c0_24 = arith.constant 0 : index
      %18 = vector.load %arg3[%c0_23, %c0_24] : memref<4x32xf32, #tpu.memory_space<vmem>>, vector<4x32xf32>
      %cst_25 = arith.constant dense<0.000000e+00> : vector<2x32xf32>
      %19 = tpu.matmul %17, %18, %cst_25 {dimension_numbers = #tpu.dot_dimension_numbers<[1], [0], [0], [1], [0, 0, 1, 1], [], []>} : vector<2x4xf32>, vector<4x32xf32>, vector<2x32xf32> -> vector<2x32xf32>
      %c0_26 = arith.constant 0 : index
      %c0_27 = arith.constant 0 : index
      %20 = vector.load %arg4[%c0_26, %c0_27] : memref<1x32xf32, #tpu.memory_space<vmem>>, vector<1x32xf32>
      %21 = vector.broadcast %20 : vector<1x32xf32> to vector<2x32xf32>
      %22 = arith.addf %19, %21 : vector<2x32xf32>
      %cst_28 = arith.constant 0.000000e+00 : f32
      %23 = vector.broadcast %cst_28 : f32 to vector<2x32xf32>
      %24 = arith.maximumf %22, %23 : vector<2x32xf32>
      %c0_29 = arith.constant 0 : index
      %c0_30 = arith.constant 0 : index
      %25 = vector.load %arg5[%c0_29, %c0_30] : memref<32x10xf32, #tpu.memory_space<vmem>>, vector<32x10xf32>
      %cst_31 = arith.constant dense<0.000000e+00> : vector<2x10xf32>
      %26 = tpu.matmul %24, %25, %cst_31 {dimension_numbers = #tpu.dot_dimension_numbers<[1], [0], [0], [1], [0, 0, 1, 1], [], []>} : vector<2x32xf32>, vector<32x10xf32>, vector<2x10xf32> -> vector<2x10xf32>
      %c0_32 = arith.constant 0 : index
      %c0_33 = arith.constant 0 : index
      %27 = vector.load %arg6[%c0_32, %c0_33] : memref<1x10xf32, #tpu.memory_space<vmem>>, vector<1x10xf32>
      %28 = vector.broadcast %27 : vector<1x10xf32> to vector<2x10xf32>
      %29 = arith.addf %26, %28 : vector<2x10xf32>
      %cst_34 = arith.constant dense<0xFF800000> : vector<2xf32>
      %30 = vector.multi_reduction <maximumf>, %29, %cst_34 [1] : vector<2x10xf32> to vector<2xf32>
      %31 = vector.shape_cast %30 : vector<2xf32> to vector<2x1xf32>
      %32 = vector.broadcast %31 : vector<2x1xf32> to vector<2x10xf32>
      %33 = arith.subf %29, %32 : vector<2x10xf32>
      %34 = math.exp %33 : vector<2x10xf32>
      %cst_35 = arith.constant dense<0.000000e+00> : vector<2xf32>
      %35 = vector.multi_reduction <add>, %34, %cst_35 [1] : vector<2x10xf32> to vector<2xf32>
      %36 = vector.shape_cast %35 : vector<2xf32> to vector<2x1xf32>
      %37 = vector.broadcast %36 : vector<2x1xf32> to vector<2x10xf32>
      %38 = arith.divf %34, %37 : vector<2x10xf32>
      %c0_36 = arith.constant 0 : index
      %c0_37 = arith.constant 0 : index
      %39 = vector.load %arg7[%c0_36, %c0_37] : memref<2x10xf32, #tpu.memory_space<vmem>>, vector<2x10xf32>
      tpu.vector_store %arg7[%c0_36, %c0_37], %38 {strides = array<i32>} : memref<2x10xf32, #tpu.memory_space<vmem>>, vector<2x10xf32>,
    } else {
    }
    return
  }
  func.func @transform_0(%arg0: i32, %arg1: i32) -> (i32, i32, i32) {
    %c0_i32 = arith.constant 0 : i32
    %c0_i32_0 = arith.constant 0 : i32
    return %arg0, %c0_i32, %arg1 : i32, i32, i32
  }
  func.func @transform_1(%arg0: i32, %arg1: i32) -> (i32, i32) {
    %c0_i32 = arith.constant 0 : i32
    %c0_i32_0 = arith.constant 0 : i32
    %c0_i32_1 = arith.constant 0 : i32
    return %c0_i32, %c0_i32_0 : i32, i32
  }
  func.func @transform_2(%arg0: i32, %arg1: i32) -> (i32, i32) {
    %c0_i32 = arith.constant 0 : i32
    %c0_i32_0 = arith.constant 0 : i32
    %c0_i32_1 = arith.constant 0 : i32
    return %c0_i32, %c0_i32_0 : i32, i32
  }
  func.func @transform_3(%arg0: i32, %arg1: i32) -> (i32, i32) {
    %c0_i32 = arith.constant 0 : i32
    %c0_i32_0 = arith.constant 0 : i32
    %c0_i32_1 = arith.constant 0 : i32
    return %c0_i32, %c0_i32_0 : i32, i32
  }
  func.func @transform_4(%arg0: i32, %arg1: i32) -> (i32, i32) {
    %c0_i32 = arith.constant 0 : i32
    %c0_i32_0 = arith.constant 0 : i32
    %c0_i32_1 = arith.constant 0 : i32
    return %c0_i32, %c0_i32_0 : i32, i32
  }
  func.func @transform_5(%arg0: i32, %arg1: i32) -> (i32, i32) {
    %c0_i32 = arith.constant 0 : i32
    %c0_i32_0 = arith.constant 0 : i32
    return %arg0, %c0_i32 : i32, i32
  }
}

</mosaic_0001>

<llo_original>
// kernel: tpu_custom_call.1
$region0: #{tpu_custom_call.1}
  #allocation0 [shape = 'u32[]', space=smem, size = 0x4, offset = 0x4, fixed_abs, tag = 'smem constant byte address 0x4 - core index']
  #allocation1 [shape = 'u32[72,128]{1,0:T(1,128)}', space=vmem, size = 0x9000, scoped, tag = 'internal scratch']
  #allocation2 [shape = 'f32[2,4,128]{2,1,0:T(4,128)}', space=vmem, size = 0x1000, scoped, tag = 'scratch operand']
  %s0 = inlined_call_operand.vmem [shape: f32[2,4,256], index: 0, kind: input, shape index: {}]
  %s1 = inlined_call_operand.vmem [shape: f32[4,32], index: 1, kind: input, shape index: {}]
  %s2 = inlined_call_operand.vmem [shape: f32[1,32], index: 2, kind: input, shape index: {}]
  %s3 = inlined_call_operand.vmem [shape: f32[32,10], index: 3, kind: input, shape index: {}]
  %s4 = inlined_call_operand.vmem [shape: f32[1,10], index: 4, kind: input, shape index: {}]
  %s5 = inlined_call_operand.hbm [shape: f32[2,10], index: 5, kind: output, shape index: {}]
  %s6 = sld [smem:[#allocation0]]
  $region38: #{tpu_custom_call.1} parent=0
    _
  %s8 = ssub.s32 1, %s6
  %s9 = scalar_select 0, %s8, %s6
  $region1: #{tpu_custom_call.1} parent=0
    #allocation3 [shape = 'u8[1024]{0}', space=vmem, size = 0x400, scoped, tag = 'output window, operand 0, single buffered']
    #allocation4 [shape = 's32[1]{0}', space=sflag, size = 0x4, scoped, tag = 'scoped memory for tpu_custom_call.1']
    %10 = vsyncpa [#allocation4], 0
    // Predicated region
    $region2: #{tpu_custom_call.1} parent=1 // pred_check
      _
    $region3: #{tpu_custom_call.1} parent=1 // pred_check_branch
      %12 = sbr.rel (0) target = $region5
    $region4: #{tpu_custom_call.1} parent=1 // pred_region
      _
    $region5: #{tpu_custom_call.1} parent=1 // pred_fallthru
      _
    // Predicated region
    $region6: #{tpu_custom_call.1} parent=1 // pred_check
      _
    $region7: #{tpu_custom_call.1} parent=1 // pred_check_branch
      %14 = sbr.rel (0) target = $region9
    $region8: #{tpu_custom_call.1} parent=1 // pred_region
      _
    $region9: #{tpu_custom_call.1} parent=1 // pred_fallthru
      _
    // Predicated region
    $region10: #{tpu_custom_call.1} parent=1 // pred_check
      _
    $region11: #{tpu_custom_call.1} parent=1 // pred_check_branch
      %16 = sbr.rel (0) target = $region13
    $region12: #{tpu_custom_call.1} parent=1 // pred_region
      _
    $region13: #{tpu_custom_call.1} parent=1 // pred_fallthru
      _
    // Predicated region
    $region14: #{tpu_custom_call.1} parent=1 // pred_check
      _
    $region15: #{tpu_custom_call.1} parent=1 // pred_check_branch
      %18 = sbr.rel (0) target = $region17
    $region16: #{tpu_custom_call.1} parent=1 // pred_region
      _
    $region17: #{tpu_custom_call.1} parent=1 // pred_fallthru
      _
    // Predicated region
    $region18: #{tpu_custom_call.1} parent=1 // pred_check
      _
    $region19: #{tpu_custom_call.1} parent=1 // pred_check_branch
      %20 = sbr.rel (0) target = $region21
    $region20: #{tpu_custom_call.1} parent=1 // pred_region
      _
    $region21: #{tpu_custom_call.1} parent=1 // pred_fallthru
      _
    %p21 = scmp.eq.s32.totalorder 0, 0
    // Predicated region
    $region22: #{tpu_custom_call.1} parent=1 // pred_check
      %p22 = pneg %p21
    $region23: #{tpu_custom_call.1} parent=1 // pred_check_branch
      %24 = sbr.rel (%p22) target = $region25
    $region24: #{tpu_custom_call.1} parent=1 // pred_region
      %25 = vst [vmem:[#allocation2] sm:$0xf] 0.0
      %26 = vst [vmem:[#allocation2 + $0x4] sm:$0xf] 0.0
    $region25: #{tpu_custom_call.1} parent=1 // pred_fallthru
      _
    %v27 = vld [vmem:[#allocation2] sm:$0xf]
    %v28 = vld [vmem:[#allocation2 + $0x4] sm:$0xf]
    %v29 = vld [vmem:[%s0] sm:$0xf]
    %v30 = vld [vmem:[%s0 + $0x8] sm:$0xf]
    %v31 = vadd.f32 %v27, %v29
    %v32 = vadd.f32 %v28, %v30
    %33 = vst [vmem:[#allocation2] sm:$0xf] %v31
    %34 = vst [vmem:[#allocation2 + $0x4] sm:$0xf] %v32
    %v35 = vld [vmem:[#allocation2] sm:$0xf]
    %v36 = vld [vmem:[#allocation2 + $0x4] sm:$0xf]
    %v37 = vld [vmem:[%s0 + $0x4] sm:$0xf]
    %v38 = vld [vmem:[%s0 + $0xc] sm:$0xf]
    %v39 = vadd.f32 %v35, %v37
    %v40 = vadd.f32 %v36, %v38
    %41 = vst [vmem:[#allocation2] sm:$0xf] %v39
    %42 = vst [vmem:[#allocation2 + $0x4] sm:$0xf] %v40
    // Predicated region
    $region26: #{tpu_custom_call.1} parent=1 // pred_check
      %p43 = pneg %p21
    $region27: #{tpu_custom_call.1} parent=1 // pred_check_branch
      %45 = sbr.rel (%p43) target = $region29
    $region28: #{tpu_custom_call.1} parent=1 // pred_region
      %v46 = vld [vmem:[#allocation2] sm:$0xf]
      %v47 = vld [vmem:[#allocation2 + $0x4] sm:$0xf]
      %vm48 = vcmask 1043456
      %v49 = vsel %vm48, %v46, 0.0
      %50 = vadd.xlane.f32.xlu0 %v49
      %v51 = vpop.xlane.xlu0 %50
      %v52 = vsel %vm48, %v47, 0.0
      %53 = vadd.xlane.f32.xlu0 %v52
      %v54 = vpop.xlane.xlu0 %53
      %v55 = vmul.f32 %v51, 0.00390625
      %v56 = vmul.f32 %v54, 0.00390625
      %v57 = vld [vmem:[%s1] sm:$0xf]
      %v58 = vld [vmem:[%s2] sm:$0x1]
      %v60 = vperm.slane %v58, 0
      %v64 = vlaneseq
      %v65 = vand.u32 %v64, 127
      %v66 = vperm.slane %v55, %v65
      %v67 = vperm.slane %v56, %v65
      %vm68 = vcmask 1041409
      %v69 = vsel %vm68, %v67, %v66
      %vm70 = vcmask 31744
      %v71 = vsel %vm70, %v69, 0
      %v74 = vsel %vm48, %v57, 0
      %76 = vmatpush.msra.mxu0 0.0
      %77 = vmatpush.msra.mxu0 0.0
      %78 = vmatpush.msra.mxu0 0.0
      %79 = vmatpush.msra.mxu0 0.0
      %80 = vmatpush.msra.mxu0 0.0
      %81 = vmatpush.msra.mxu0 0.0
      %82 = vmatpush.msra.mxu0 0.0
      %83 = vmatpush.msra.mxu0 0.0
      %84 = vmatpush.msra.mxu0 0.0
      %85 = vmatpush.msra.mxu0 0.0
      %86 = vmatpush.msra.mxu0 0.0
      %87 = vmatpush.msra.mxu0 0.0
      %88 = vmatpush.msra.mxu0 0.0
      %89 = vmatpush.msra.mxu0 0.0
      %90 = vmatpush.msra.mxu0 0.0
      %91 = vmatpush.msra.mxu0 %v74
      %92 = vmatmul.f32.gmra.mxu0 %v71
      %v93 = vpop.f32.mrf.mxu0
      %v94 = vadd.f32 %v60, %v93
      %95 = vdwg.mxu0
      %v96 = vmax.f32 %v94, 0.0
      %v97 = vld [vmem:[%s3] sm:$0xff]
      %v98 = vld [vmem:[%s3 + $0x8] sm:$0xff]
      %v99 = vld [vmem:[%s3 + $0x10] sm:$0xff]
      %v100 = vld [vmem:[%s3 + $0x18] sm:$0xff]
      %v101 = vld [vmem:[%s4] sm:$0x1]
      %v103 = vperm.slane %v101, 0
      %vm105 = vcmask 261120
      %v107 = vsel %vm105, %v96, 0
      %109 = vmatpush.msra.mxu0 0.0
      %110 = vmatpush.msra.mxu0 0.0
      %111 = vmatpush.msra.mxu0 0.0
      %112 = vmatpush.msra.mxu0 0.0
      %113 = vmatpush.msra.mxu0 0.0
      %114 = vmatpush.msra.mxu0 0.0
      %115 = vmatpush.msra.mxu0 0.0
      %116 = vmatpush.msra.mxu0 0.0
      %117 = vmatpush.msra.mxu0 0.0
      %118 = vmatpush.msra.mxu0 0.0
      %119 = vmatpush.msra.mxu0 0.0
      %120 = vmatpush.msra.mxu0 0.0
      %121 = vmatpush.msra.mxu0 %v100
      %122 = vmatpush.msra.mxu0 %v99
      %123 = vmatpush.msra.mxu0 %v98
      %124 = vmatpush.msra.mxu0 %v97
      %125 = vmatmul.f32.gmra.mxu0 %v107
      %v126 = vpop.f32.mrf.mxu0
      %v127 = vadd.f32 %v103, %v126
      %128 = vdwg.mxu0
      %vm129 = vcmask 74752
      %v130 = vsel %vm129, %v127, -inf
      %131 = vmax.xlane.f32.xlu0 %v130
      %v132 = vpop.xlane.xlu0 %131
      %v133 = vsub.f32 %v127, %v132
      %v134 = vmul.f32 %v133, 1.442695
      %v135 = vpow.pop %v134
      %v136 = vsel %vm129, %v135, 0.0
      %137 = vadd.xlane.f32.xlu0 %v136
      %v138 = vpop.xlane.xlu0 %137
      %v139 = vrcp.pop %v138
      %v140 = vmul.f32 %v138, %v139
      %v141 = vsub.f32 1.0, %v140
      %v142 = vmul.f32 %v139, %v141
      %v143 = vadd.f32 %v139, %v142
      %vm144 = vweird.f32 %v138
      %vm145 = vweird.f32 %v139
      %vm146 = vmor %vm144, %vm145
      %v147 = vsel %vm146, %v139, %v143
      %v148 = vand.u32 2147483647, %v138
      %vm149 = vcmp.eq.f32.partialorder %v148, 8.507059e+37
      %v150 = vand.u32 %v138, 2147483648
      %v151 = vor.u32 1.1754944e-38, %v150
      %v152 = vsel %vm149, %v151, %v147
      %v153 = vmul.f32 %v135, %v152
      %154 = vst.msk [vmem:[#allocation3] sm:$0x3] %vm129, %v153
    $region29: #{tpu_custom_call.1} parent=1 // pred_fallthru
      _
    // Predicated region
    $region30: #{tpu_custom_call.1} parent=1 // pred_check
      _
    $region31: #{tpu_custom_call.1} parent=1 // pred_check_branch
      %156 = sbr.rel (0) target = $region33
    $region32: #{tpu_custom_call.1} parent=1 // pred_region
      %158 = vsyncadd [#allocation4], 0
      %s160 = sshll.u32 [#allocation3], 4
      %s161 = int_to_ptr.vmem [resolvable:$true] %s160
      %s162 = sshll.u32 %s5, 4
      %s163 = int_to_ptr.hbm [resolvable:$true] %s162
      %165 = dma.vmem_to_hbm [thread:$0]  %s161, 32, %s163, [#allocation4]
    $region33: #{tpu_custom_call.1} parent=1 // pred_fallthru
      _
    // Predicated region
    $region34: #{tpu_custom_call.1} parent=1 // pred_check
      _
    $region35: #{tpu_custom_call.1} parent=1 // pred_check_branch
      %167 = sbr.rel (0) target = $region37
    $region36: #{tpu_custom_call.1} parent=1 // pred_region
      %169 = dma.done [#allocation4], 32
    $region37: #{tpu_custom_call.1} parent=1 // pred_fallthru
      _
    %170 = vsyncpa [#allocation4], 1

</llo_original>
